<compile_context>
chip_gen: v6e
topology: v6e:2x2x1
jax: 0.10.0
libtpu: 0.0.40
codegen_flags: <defaults>
</compile_context>

<pallas_src>
import jax
import jax.numpy as jnp
from jax.experimental import pallas as pl
from jax.experimental.pallas import tpu as pltpu


def _ratio_kernel(m_ref, o_ref):
    # m_ref, o_ref: (1, 1) f32 VMEM tiles.  sigmoid(x) = 1 / (1 + exp(-x)).
    m = m_ref[...]
    o_ref[...] = 1.0 / (1.0 + jnp.exp(-m))


def ratio_forward(multp):
    """multp: scalar (0-d) f32 parameter -> scalar f32 = sigmoid(multp)."""
    m = jnp.asarray(multp, jnp.float32).reshape(1, 1)
    out = pl.pallas_call(
        _ratio_kernel,
        out_shape=jax.ShapeDtypeStruct((1, 1), jnp.float32),
        in_specs=[pl.BlockSpec(memory_space=pltpu.MemorySpace.VMEM)],
        out_specs=pl.BlockSpec(memory_space=pltpu.MemorySpace.VMEM),
    )(m)
    return out.reshape(())


if __name__ == "__main__":
    key = jax.random.PRNGKey(0)
    # Mirrors torch.tensor(np.random.uniform(0, 1)): a scalar drawn in [0, 1).
    multp = jax.random.uniform(key, (), dtype=jnp.float32)

    out = ratio_forward(multp)
    jax.block_until_ready(out)

    ref = jax.nn.sigmoid(multp)
    assert out.shape == ()
    assert jnp.allclose(out, ref, atol=1e-6, rtol=1e-6)

    print("KERNEL_OK")
</pallas_src>

<mosaic_0001>
module attributes {stable_mosaic.version = 11 : i64} {
  func.func @_ratio_kernel(%arg0: memref<1x1xf32, #tpu.memory_space<vmem>>, %arg1: memref<1x1xf32, #tpu.memory_space<vmem>>) attributes {dimension_semantics = [], scalar_prefetch = 0 : i64, scratch_operands = 0 : i64, tpu.core_type = #tpu.core_type<tc>} {
    %c0 = arith.constant 0 : index
    %c0_0 = arith.constant 0 : index
    %0 = vector.load %arg0[%c0, %c0_0] : memref<1x1xf32, #tpu.memory_space<vmem>>, vector<1x1xf32>
    %cst = arith.constant 0.000000e+00 : f32
    %1 = vector.broadcast %cst : f32 to vector<1x1xf32>
    %2 = arith.subf %1, %0 : vector<1x1xf32>
    %3 = math.exp %2 : vector<1x1xf32>
    %cst_1 = arith.constant 1.000000e+00 : f32
    %4 = vector.broadcast %cst_1 : f32 to vector<1x1xf32>
    %5 = arith.addf %4, %3 : vector<1x1xf32>
    %cst_2 = arith.constant 1.000000e+00 : f32
    %6 = vector.broadcast %cst_2 : f32 to vector<1x1xf32>
    %7 = arith.divf %6, %5 : vector<1x1xf32>
    %c0_3 = arith.constant 0 : index
    %c0_4 = arith.constant 0 : index
    %8 = vector.load %arg1[%c0_3, %c0_4] : memref<1x1xf32, #tpu.memory_space<vmem>>, vector<1x1xf32>
    tpu.vector_store %arg1[%c0_3, %c0_4], %7 {strides = array<i32>} : memref<1x1xf32, #tpu.memory_space<vmem>>, vector<1x1xf32>,
    return
  }
}

</mosaic_0001>

<llo_original>
// kernel: tpu_custom_call.1
$region0: #{tpu_custom_call.1}
  #allocation0 [shape = 'u32[]', space=smem, size = 0x4, offset = 0x4, fixed_abs, tag = 'smem constant byte address 0x4 - core index']
  #allocation1 [shape = 'u32[144,128]{1,0:T(1,128)}', space=vmem, size = 0x12000, scoped, tag = 'internal scratch']
  #allocation2 [shape = 'f32[1,1]{1,0:T(1,128)S(1)}', space=vmem, size = 0x200, scoped, tag = 'scoped memory for tpu_custom_call.1']
  %s0 = inlined_call_operand.<no memory space> [shape: f32[1,1], index: 0, kind: input, shape index: {}]
  %s1 = inlined_call_operand.hbm [shape: f32[1,1], index: 1, kind: output, shape index: {}]
  %s2 = sld [smem:[#allocation0]]
  $region14: #{tpu_custom_call.1} parent=0
    _
  %s4 = ssub.s32 1, %s2
  %s5 = scalar_select 0, %s4, %s2
  %v6 = vstv %s0
  %7 = vst [vmem:[#allocation2] sm:$0x1] %v6
  $region1: #{tpu_custom_call.1} parent=0
    #allocation3 [shape = 'u8[512]{0}', space=vmem, size = 0x400, scoped, tag = 'output window, operand 0, single buffered']
    #allocation4 [shape = 's32[1]{0}', space=sflag, size = 0x4, scoped, tag = 'scoped memory for tpu_custom_call.1']
    %8 = vsyncpa [#allocation4], 0
    // Predicated region
    $region2: #{tpu_custom_call.1} parent=1 // pred_check
      _
    $region3: #{tpu_custom_call.1} parent=1 // pred_check_branch
      %10 = sbr.rel (0) target = $region5
    $region4: #{tpu_custom_call.1} parent=1 // pred_region
      _
    $region5: #{tpu_custom_call.1} parent=1 // pred_fallthru
      _
    %v11 = vld [vmem:[#allocation2] sm:$0x1]
    %v12 = vsub.f32 0.0, %v11
    %v13 = vmul.f32 %v12, 1.442695
    %v14 = vpow.pop %v13
    %v15 = vadd.f32 %v14, 1.0
    %v16 = vrcp.pop %v15
    %v17 = vmul.f32 1.0, %v16
    %vm18 = vcmask 0
    %19 = vst.msk [vmem:[#allocation3] sm:$0x1] %vm18, %v17
    // Predicated region
    $region6: #{tpu_custom_call.1} parent=1 // pred_check
      _
    $region7: #{tpu_custom_call.1} parent=1 // pred_check_branch
      %21 = sbr.rel (0) target = $region9
    $region8: #{tpu_custom_call.1} parent=1 // pred_region
      %s23 = ssub.s32 16, 16
      %24 = vsyncadd [#allocation4], %s23
      %s26 = sshll.u32 [#allocation3], 4
      %s27 = int_to_ptr.vmem [resolvable:$true] %s26
      %29 = dma.vmem_to_hbm [thread:$0]  %s27, 16, %s1, [#allocation4]
    $region9: #{tpu_custom_call.1} parent=1 // pred_fallthru
      _
    // Predicated region
    $region10: #{tpu_custom_call.1} parent=1 // pred_check
      _
    $region11: #{tpu_custom_call.1} parent=1 // pred_check_branch
      %31 = sbr.rel (0) target = $region13
    $region12: #{tpu_custom_call.1} parent=1 // pred_region
      %32 = dma.done [#allocation4], 16
    $region13: #{tpu_custom_call.1} parent=1 // pred_fallthru
      _
    %33 = vsyncpa [#allocation4], 1

</llo_original>
